<compile_context>
chip_gen: v5e
topology: v5e:2x2
jax: 0.10.0
libtpu: 0.0.40
codegen_flags: <defaults>
</compile_context>

<pallas_src>
import jax
import jax.numpy as jnp
from jax import lax
from jax.experimental import pallas as pl
from jax.experimental.pallas import tpu as pltpu

LANE = 128


def _round_up(x: int, m: int) -> int:
    return ((x + m - 1) // m) * m


def _make_loss_kernel(n_rows, tile_rows, num_classes, n_tiles, tiles_per_core,
                      need_skip, has_ragged):
    N = int(n_rows)          # true number of (B*T) rows
    TN = int(tile_rows)      # rows per structure tile
    C = int(num_classes)
    G = int(n_tiles)         # total number of row tiles
    G2 = int(tiles_per_core)

    def kernel(logits_ref, tgt_ref, pred_ref, ltgt_ref, lmask_ref,
               out_ref, acc_ce_ref, acc_sq_ref):
        c = pl.program_id(0)
        i = pl.program_id(1)
        t = c * G2 + i                       # global row-tile index (unclamped)

        @pl.when(i == 0)
        def _init():
            acc_ce_ref[...] = jnp.zeros_like(acc_ce_ref)
            acc_sq_ref[...] = jnp.zeros_like(acc_sq_ref)

        # ---- structure branch: per-row CE over C classes --------------------
        def structure_body(mask_rows):
            logits = logits_ref[...].astype(jnp.float32)             # (TN, C)
            tgt = tgt_ref[...]                                        # (TN, 1)
            if mask_rows:
                rows = t * TN + lax.broadcasted_iota(jnp.int32, (TN, 1), 0)
                valid = rows < N
                # Sanitize the ragged tail BEFORE max/exp: out-of-bounds rows may
                # contain garbage (NaN/Inf) that would poison sumexp otherwise.
                logits = jnp.where(valid, logits, 0.0)
            class_ids = lax.broadcasted_iota(jnp.int32, (TN, C), 1)
            row_max = jnp.max(logits, axis=-1, keepdims=True)
            picked = jnp.sum(jnp.where(class_ids == tgt, logits, 0.0),
                             axis=-1, keepdims=True)                  # logits[r, tgt_r]
            sumexp = jnp.sum(jnp.exp(logits - row_max), axis=-1, keepdims=True)
            ce = jnp.log(sumexp) + row_max - picked                   # (TN, 1)
            if mask_rows:
                ce = jnp.where(valid, ce, 0.0)
            acc_ce_ref[...] += ce        # elementwise; reduced once in finalize

        if has_ragged:
            @pl.when(t == G - 1)
            def _ragged():
                structure_body(True)

            @pl.when(t < G - 1)
            def _full():
                structure_body(False)
        elif need_skip:
            @pl.when(t < G)
            def _guarded():
                structure_body(False)
        else:
            structure_body(False)

        # ---- loc branch: masked MSE on lane-dense tiles ----------------------
        def loc_body():
            diff = (pred_ref[...].astype(jnp.float32)
                    * lmask_ref[...].astype(jnp.float32)
                    - ltgt_ref[...].astype(jnp.float32))
            acc_sq_ref[...] += diff * diff   # elementwise; reduced once in finalize

        if need_skip:
            @pl.when(t < G)
            def _loc_guarded():
                loc_body()
        else:
            loc_body()

        # ---- per-core finalize: emit partial sums as one (8,128) tile --------
        @pl.when(i == G2 - 1)
        def _finalize():
            ce_sum = jnp.sum(acc_ce_ref[...])
            sq_sum = jnp.sum(acc_sq_ref[...])
            sub = lax.broadcasted_iota(jnp.int32, (8, LANE), 0)
            lane = lax.broadcasted_iota(jnp.int32, (8, LANE), 1)
            first = sub == 0
            out_ref[...] = jnp.where(first & (lane == 0), ce_sum,
                                     jnp.where(first & (lane == 1), sq_sum, 0.0))

    return kernel


def table_attention_loss(predicts, batch, structure_weight, loc_weight,
                         *, tile_rows=2048, num_cores=2):
    """JAX/Pallas equivalent of TableAttentionLoss.forward."""
    structure_probs = predicts["structure_probs"]               # [B, T, C] logits
    loc_preds = predicts["loc_preds"]                           # [B, T, D]

    structure_targets = batch[1].astype(jnp.int32)[:, 1:]       # [B, T]
    loc_targets = batch[2][:, 1:, :]                            # [B, T, D]
    loc_targets_mask = batch[3][:, 1:, :]                       # [B, T, D]
    if loc_targets_mask.dtype == jnp.bool_:
        loc_targets_mask = loc_targets_mask.astype(loc_preds.dtype)

    B, T, C = structure_probs.shape
    D = loc_preds.shape[-1]
    N = B * T
    ND = N * D

    # Row tile: multiple of 8, never larger than the (8-aligned) row count so the
    # block always fits the un-padded array; auto-shrunk to a VMEM budget that is
    # comfortable on all of v5e/v6e/v7x.
    tn_cap = (N // 8) * 8 if N >= 8 else 8
    TN = max(8, min(_round_up(int(tile_rows), 8), tn_cap))
    C_pad = _round_up(C, LANE)
    in_itemsize = structure_probs.dtype.itemsize
    VMEM_BUDGET = 28 * 1024 * 1024

    while True:
        G = -(-max(N, TN) // TN)                      # number of row tiles
        rows_needed = -(-ND // LANE)
        TL = _round_up(-(-rows_needed // G), 8)       # loc rows per tile
        vmem_est = (2 * TN * C_pad * in_itemsize      # logits double buffer
                    + 2 * TN * LANE * 4               # int32 target double buffer
                    + 6 * TL * LANE * 4               # loc tiles: 3 arrays x 2 bufs
                    + 6 * TN * C_pad * 4              # f32 temporaries (headroom)
                    + TN * LANE * 4 + TL * LANE * 4)  # accumulators
        if vmem_est <= VMEM_BUDGET or TN <= 256:
            break
        TN = max(256, _round_up(TN // 2, 8))

    has_ragged = (N % TN) != 0

    # Split row tiles across (up to) two TensorCores; serial (and harmless) on
    # single-core chips.
    num_cores_eff = max(1, min(int(num_cores), G))
    G2 = -(-G // num_cores_eff)
    need_skip = num_cores_eff * G2 > G

    # ---- structure inputs: no full-size pad/copy (ragged tail handled in-kernel)
    logits = structure_probs.reshape(N, C)
    tgt = structure_targets.reshape(N, 1)
    if N < TN:   # only possible when N < 8: tiny pad so the block fits the array
        logits = jnp.pad(logits, ((0, TN - N), (0, 0)))
        tgt = jnp.pad(tgt, ((0, TN - N), (0, 0)))

    # ---- loc inputs: lane-dense [G*TL, 128]; zero padding contributes zero ----
    ND_pad = G * TL * LANE

    def _lane_dense(x):
        x = x.reshape(-1)
        if ND_pad > ND:
            x = jnp.pad(x, (0, ND_pad - ND))
        return x.reshape(G * TL, LANE)

    pred = _lane_dense(loc_preds)
    ltgt = _lane_dense(loc_targets)
    lmask = _lane_dense(loc_targets_mask)

    def tile_idx(c, i):
        idx = c * G2 + i
        if need_skip:
            idx = jnp.minimum(idx, G - 1)   # clamp; kernel skips the duplicate tile
        return idx

    row_map = lambda c, i: (tile_idx(c, i), 0)

    kernel = _make_loss_kernel(N, TN, C, G, G2, need_skip, has_ragged)

    cost = pl.CostEstimate(
        flops=int(N * (6 * C + 8) + 4 * ND),
        transcendentals=int(N * (C + 1)),
        bytes_accessed=int(logits.size * logits.dtype.itemsize
                           + tgt.size * tgt.dtype.itemsize
                           + pred.size * pred.dtype.itemsize
                           + ltgt.size * ltgt.dtype.itemsize
                           + lmask.size * lmask.dtype.itemsize
                           + num_cores_eff * 8 * LANE * 4))

    partials = pl.pallas_call(
        kernel,
        out_shape=jax.ShapeDtypeStruct((num_cores_eff * 8, LANE), jnp.float32),
        grid=(num_cores_eff, G2),
        in_specs=[
            pl.BlockSpec((TN, C), row_map),        # logits tile (native dtype)
            pl.BlockSpec((TN, 1), row_map),        # int32 targets tile
            pl.BlockSpec((TL, LANE), row_map),     # loc preds (lane-dense)
            pl.BlockSpec((TL, LANE), row_map),     # loc targets (lane-dense)
            pl.BlockSpec((TL, LANE), row_map),     # loc mask (lane-dense)
        ],
        out_specs=pl.BlockSpec((8, LANE), lambda c, i: (c, 0)),
        scratch_shapes=[
            pltpu.VMEM((TN, 1), jnp.float32),      # unreduced per-row CE sums
            pltpu.VMEM((TL, LANE), jnp.float32),   # unreduced squared-diff sums
        ],
        compiler_params=pltpu.CompilerParams(
            dimension_semantics=("parallel", "arbitrary"),
            vmem_limit_bytes=40 * 1024 * 1024),
        cost_estimate=cost,
    )(logits, tgt, pred, ltgt, lmask)

    per_core = partials.reshape(num_cores_eff, 8, LANE)
    ce_sum = jnp.sum(per_core[:, 0, 0])
    sq_sum = jnp.sum(per_core[:, 0, 1])

    structure_loss = ce_sum * (float(structure_weight) / N)
    loc_loss = sq_sum * (float(loc_weight) / ND)
    total_loss = structure_loss + loc_loss
    return {
        "loss": total_loss,
        "structure_loss": structure_loss,
        "loc_loss": loc_loss,
    }


def _reference(predicts, batch, structure_weight, loc_weight):
    """Pure-JAX reference mirroring the PyTorch semantics."""
    sp = predicts["structure_probs"]
    st = batch[1].astype(jnp.int32)[:, 1:]
    logits = sp.reshape(-1, sp.shape[-1]).astype(jnp.float32)
    tgt = st.reshape(-1)
    logp = jax.nn.log_softmax(logits, axis=-1)
    ce = -jnp.take_along_axis(logp, tgt[:, None], axis=-1)[:, 0]
    structure_loss = jnp.mean(ce) * structure_weight

    lp = predicts["loc_preds"].astype(jnp.float32)
    lt = batch[2].astype(jnp.float32)[:, 1:, :]
    lm = batch[3].astype(jnp.float32)[:, 1:, :]
    loc_loss = jnp.mean((lp * lm - lt) ** 2) * loc_weight
    return structure_loss + loc_loss, structure_loss, loc_loss


if __name__ == "__main__":
    key = jax.random.PRNGKey(0)
    k1, k2, k3, k4, k5 = jax.random.split(key, 5)

    # small shapes; N = B*T = 14 is not a multiple of 8, so the ragged-tile path
    # and the 2-way core split (grid (2, 1)) are both exercised.
    B, Tp1, C, D = 2, 8, 30, 4       # batch, seq(+1 leading token), classes, box dims
    T = Tp1 - 1

    structure_probs = jax.random.normal(k1, (B, T, C), dtype=jnp.float32)
    loc_preds = jax.random.normal(k2, (B, T, D), dtype=jnp.float32)

    structure_targets = jax.random.randint(k3, (B, Tp1), 0, C, dtype=jnp.int32)
    loc_targets = jax.random.normal(k4, (B, Tp1, D), dtype=jnp.float32)
    loc_targets_mask = (jax.random.uniform(k5, (B, Tp1, D)) > 0.3).astype(jnp.float32)

    predicts = {"structure_probs": structure_probs, "loc_preds": loc_preds}
    batch = [None, structure_targets, loc_targets, loc_targets_mask]

    structure_weight, loc_weight = 1.0, 2.0

    out = table_attention_loss(predicts, batch, structure_weight, loc_weight)
    out = jax.tree_util.tree_map(jax.block_until_ready, out)

    ref_total, ref_struct, ref_loc = _reference(predicts, batch, structure_weight, loc_weight)
    assert jnp.allclose(out["loss"], ref_total, rtol=1e-5, atol=1e-5)
    assert jnp.allclose(out["structure_loss"], ref_struct, rtol=1e-5, atol=1e-5)
    assert jnp.allclose(out["loc_loss"], ref_loc, rtol=1e-5, atol=1e-5)

    print("KERNEL_OK")
</pallas_src>

<mosaic_0001>
module attributes {stable_mosaic.version = 11 : i64} {
  func.func @kernel(%arg0: i32, %arg1: i32, %arg2: memref<8x30xf32, #tpu.memory_space<vmem>>, %arg3: memref<8x1xi32, #tpu.memory_space<vmem>>, %arg4: memref<8x128xf32, #tpu.memory_space<vmem>>, %arg5: memref<8x128xf32, #tpu.memory_space<vmem>>, %arg6: memref<8x128xf32, #tpu.memory_space<vmem>>, %arg7: memref<8x128xf32, #tpu.memory_space<vmem>>, %arg8: memref<8x1xf32, #tpu.memory_space<vmem>>, %arg9: memref<8x128xf32, #tpu.memory_space<vmem>>) attributes {dimension_semantics = [#tpu.dimension_semantics<parallel>, #tpu.dimension_semantics<arbitrary>], iteration_bounds = array<i64: 2, 1>, scalar_prefetch = 0 : i64, scratch_operands = 2 : i64, tpu.core_type = #tpu.core_type<tc>, window_params = [{transform_indices = @transform_0, window_bounds = array<i64: 8, 30>}, {transform_indices = @transform_1, window_bounds = array<i64: 8, 1>}, {transform_indices = @transform_2, window_bounds = array<i64: 8, 128>}, {transform_indices = @transform_3, window_bounds = array<i64: 8, 128>}, {transform_indices = @transform_4, window_bounds = array<i64: 8, 128>}, {transform_indices = @transform_5, window_bounds = array<i64: 8, 128>}]} {
    %c1_i32 = arith.constant 1 : i32
    %0 = arith.muli %arg0, %c1_i32 : i32
    %1 = arith.addi %0, %arg1 : i32
    %c0_i32 = arith.constant 0 : i32
    %2 = arith.cmpi eq, %arg1, %c0_i32 : i32
    %3 = arith.extui %2 : i1 to i32
    %c0_i32_0 = arith.constant 0 : i32
    %4 = arith.cmpi ne, %3, %c0_i32_0 : i32
    scf.if %4 {
      %cst = arith.constant 0.000000e+00 : f32
      %23 = vector.broadcast %cst : f32 to vector<8x1xf32>
      %c0_16 = arith.constant 0 : index
      %c0_17 = arith.constant 0 : index
      %24 = vector.load %arg8[%c0_16, %c0_17] : memref<8x1xf32, #tpu.memory_space<vmem>>, vector<8x1xf32>
      tpu.vector_store %arg8[%c0_16, %c0_17], %23 {strides = array<i32>} : memref<8x1xf32, #tpu.memory_space<vmem>>, vector<8x1xf32>,
      %cst_18 = arith.constant 0.000000e+00 : f32
      %25 = vector.broadcast %cst_18 : f32 to vector<8x128xf32>
      %c0_19 = arith.constant 0 : index
      %c0_20 = arith.constant 0 : index
      %26 = vector.load %arg9[%c0_19, %c0_20] : memref<8x128xf32, #tpu.memory_space<vmem>>, vector<8x128xf32>
      tpu.vector_store %arg9[%c0_19, %c0_20], %25 {strides = array<i32>} : memref<8x128xf32, #tpu.memory_space<vmem>>, vector<8x128xf32>,
    } else {
    }
    %c1_i32_1 = arith.constant 1 : i32
    %5 = arith.cmpi eq, %1, %c1_i32_1 : i32
    %6 = arith.extui %5 : i1 to i32
    %c0_i32_2 = arith.constant 0 : i32
    %7 = arith.cmpi ne, %6, %c0_i32_2 : i32
    scf.if %7 {
      %c0_16 = arith.constant 0 : index
      %c0_17 = arith.constant 0 : index
      %23 = vector.load %arg2[%c0_16, %c0_17] : memref<8x30xf32, #tpu.memory_space<vmem>>, vector<8x30xf32>
      %c0_18 = arith.constant 0 : index
      %c0_19 = arith.constant 0 : index
      %24 = vector.load %arg3[%c0_18, %c0_19] : memref<8x1xi32, #tpu.memory_space<vmem>>, vector<8x1xi32>
      %c8_i32 = arith.constant 8 : i32
      %25 = arith.muli %1, %c8_i32 : i32
      %26 = tpu.iota {dimensions = array<i32: 0>} : vector<8x1xi32>
      %27 = vector.broadcast %25 : i32 to vector<8x1xi32>
      %28 = arith.addi %27, %26 : vector<8x1xi32>
      %c14_i32 = arith.constant 14 : i32
      %29 = vector.broadcast %c14_i32 : i32 to vector<8x1xi32>
      %30 = arith.cmpi slt, %28, %29 : vector<8x1xi32>
      %cst = arith.constant 0.000000e+00 : f32
      %31 = vector.shape_cast %30 : vector<8x1xi1> to vector<8x1xi1>
      %32 = vector.broadcast %31 : vector<8x1xi1> to vector<8x30xi1>
      %33 = vector.broadcast %cst : f32 to vector<8x30xf32>
      %34 = arith.select %32, %23, %33 : vector<8x30xi1>, vector<8x30xf32>
      %35 = tpu.iota {dimensions = array<i32: 1>} : vector<8x30xi32>
      %cst_20 = arith.constant dense<0xFF800000> : vector<8xf32>
      %36 = vector.multi_reduction <maximumf>, %34, %cst_20 [1] : vector<8x30xf32> to vector<8xf32>
      %37 = vector.shape_cast %36 : vector<8xf32> to vector<8x1xf32>
      %38 = vector.broadcast %24 : vector<8x1xi32> to vector<8x30xi32>
      %39 = arith.cmpi eq, %35, %38 : vector<8x30xi32>
      %cst_21 = arith.constant 0.000000e+00 : f32
      %40 = vector.broadcast %cst_21 : f32 to vector<8x30xf32>
      %41 = arith.select %39, %34, %40 : vector<8x30xi1>, vector<8x30xf32>
      %cst_22 = arith.constant dense<0.000000e+00> : vector<8xf32>
      %42 = vector.multi_reduction <add>, %41, %cst_22 [1] : vector<8x30xf32> to vector<8xf32>
      %43 = vector.shape_cast %42 : vector<8xf32> to vector<8x1xf32>
      %44 = vector.broadcast %37 : vector<8x1xf32> to vector<8x30xf32>
      %45 = arith.subf %34, %44 : vector<8x30xf32>
      %46 = math.exp %45 : vector<8x30xf32>
      %cst_23 = arith.constant dense<0.000000e+00> : vector<8xf32>
      %47 = vector.multi_reduction <add>, %46, %cst_23 [1] : vector<8x30xf32> to vector<8xf32>
      %48 = vector.shape_cast %47 : vector<8xf32> to vector<8x1xf32>
      %49 = math.log %48 : vector<8x1xf32>
      %50 = arith.addf %49, %37 : vector<8x1xf32>
      %51 = arith.subf %50, %43 : vector<8x1xf32>
      %cst_24 = arith.constant 0.000000e+00 : f32
      %52 = vector.broadcast %cst_24 : f32 to vector<8x1xf32>
      %53 = arith.select %30, %51, %52 : vector<8x1xi1>, vector<8x1xf32>
      %c0_25 = arith.constant 0 : index
      %c0_26 = arith.constant 0 : index
      %54 = vector.load %arg8[%c0_25, %c0_26] : memref<8x1xf32, #tpu.memory_space<vmem>>, vector<8x1xf32>
      %55 = arith.addf %54, %53 : vector<8x1xf32>
      %c0_27 = arith.constant 0 : index
      %c0_28 = arith.constant 0 : index
      %56 = vector.load %arg8[%c0_27, %c0_28] : memref<8x1xf32, #tpu.memory_space<vmem>>, vector<8x1xf32>
      tpu.vector_store %arg8[%c0_27, %c0_28], %55 {strides = array<i32>} : memref<8x1xf32, #tpu.memory_space<vmem>>, vector<8x1xf32>,
    } else {
    }
    %c1_i32_3 = arith.constant 1 : i32
    %8 = arith.cmpi slt, %1, %c1_i32_3 : i32
    %9 = arith.extui %8 : i1 to i32
    %c0_i32_4 = arith.constant 0 : i32
    %10 = arith.cmpi ne, %9, %c0_i32_4 : i32
    scf.if %10 {
      %c0_16 = arith.constant 0 : index
      %c0_17 = arith.constant 0 : index
      %23 = vector.load %arg2[%c0_16, %c0_17] : memref<8x30xf32, #tpu.memory_space<vmem>>, vector<8x30xf32>
      %c0_18 = arith.constant 0 : index
      %c0_19 = arith.constant 0 : index
      %24 = vector.load %arg3[%c0_18, %c0_19] : memref<8x1xi32, #tpu.memory_space<vmem>>, vector<8x1xi32>
      %25 = tpu.iota {dimensions = array<i32: 1>} : vector<8x30xi32>
      %cst = arith.constant dense<0xFF800000> : vector<8xf32>
      %26 = vector.multi_reduction <maximumf>, %23, %cst [1] : vector<8x30xf32> to vector<8xf32>
      %27 = vector.shape_cast %26 : vector<8xf32> to vector<8x1xf32>
      %28 = vector.broadcast %24 : vector<8x1xi32> to vector<8x30xi32>
      %29 = arith.cmpi eq, %25, %28 : vector<8x30xi32>
      %cst_20 = arith.constant 0.000000e+00 : f32
      %30 = vector.broadcast %cst_20 : f32 to vector<8x30xf32>
      %31 = arith.select %29, %23, %30 : vector<8x30xi1>, vector<8x30xf32>
      %cst_21 = arith.constant dense<0.000000e+00> : vector<8xf32>
      %32 = vector.multi_reduction <add>, %31, %cst_21 [1] : vector<8x30xf32> to vector<8xf32>
      %33 = vector.shape_cast %32 : vector<8xf32> to vector<8x1xf32>
      %34 = vector.broadcast %27 : vector<8x1xf32> to vector<8x30xf32>
      %35 = arith.subf %23, %34 : vector<8x30xf32>
      %36 = math.exp %35 : vector<8x30xf32>
      %cst_22 = arith.constant dense<0.000000e+00> : vector<8xf32>
      %37 = vector.multi_reduction <add>, %36, %cst_22 [1] : vector<8x30xf32> to vector<8xf32>
      %38 = vector.shape_cast %37 : vector<8xf32> to vector<8x1xf32>
      %39 = math.log %38 : vector<8x1xf32>
      %40 = arith.addf %39, %27 : vector<8x1xf32>
      %41 = arith.subf %40, %33 : vector<8x1xf32>
      %c0_23 = arith.constant 0 : index
      %c0_24 = arith.constant 0 : index
      %42 = vector.load %arg8[%c0_23, %c0_24] : memref<8x1xf32, #tpu.memory_space<vmem>>, vector<8x1xf32>
      %43 = arith.addf %42, %41 : vector<8x1xf32>
      %c0_25 = arith.constant 0 : index
      %c0_26 = arith.constant 0 : index
      %44 = vector.load %arg8[%c0_25, %c0_26] : memref<8x1xf32, #tpu.memory_space<vmem>>, vector<8x1xf32>
      tpu.vector_store %arg8[%c0_25, %c0_26], %43 {strides = array<i32>} : memref<8x1xf32, #tpu.memory_space<vmem>>, vector<8x1xf32>,
    } else {
    }
    %c0 = arith.constant 0 : index
    %c0_5 = arith.constant 0 : index
    %11 = vector.load %arg4[%c0, %c0_5] : memref<8x128xf32, #tpu.memory_space<vmem>>, vector<8x128xf32>
    %c0_6 = arith.constant 0 : index
    %c0_7 = arith.constant 0 : index
    %12 = vector.load %arg6[%c0_6, %c0_7] : memref<8x128xf32, #tpu.memory_space<vmem>>, vector<8x128xf32>
    %13 = arith.mulf %11, %12 : vector<8x128xf32>
    %c0_8 = arith.constant 0 : index
    %c0_9 = arith.constant 0 : index
    %14 = vector.load %arg5[%c0_8, %c0_9] : memref<8x128xf32, #tpu.memory_space<vmem>>, vector<8x128xf32>
    %15 = arith.subf %13, %14 : vector<8x128xf32>
    %c0_10 = arith.constant 0 : index
    %c0_11 = arith.constant 0 : index
    %16 = vector.load %arg9[%c0_10, %c0_11] : memref<8x128xf32, #tpu.memory_space<vmem>>, vector<8x128xf32>
    %17 = arith.mulf %15, %15 : vector<8x128xf32>
    %18 = arith.addf %16, %17 : vector<8x128xf32>
    %c0_12 = arith.constant 0 : index
    %c0_13 = arith.constant 0 : index
    %19 = vector.load %arg9[%c0_12, %c0_13] : memref<8x128xf32, #tpu.memory_space<vmem>>, vector<8x128xf32>
    tpu.vector_store %arg9[%c0_12, %c0_13], %18 {strides = array<i32>} : memref<8x128xf32, #tpu.memory_space<vmem>>, vector<8x128xf32>,
    %c0_i32_14 = arith.constant 0 : i32
    %20 = arith.cmpi eq, %arg1, %c0_i32_14 : i32
    %21 = arith.extui %20 : i1 to i32
    %c0_i32_15 = arith.constant 0 : i32
    %22 = arith.cmpi ne, %21, %c0_i32_15 : i32
    scf.if %22 {
      %c0_16 = arith.constant 0 : index
      %c0_17 = arith.constant 0 : index
      %23 = vector.load %arg8[%c0_16, %c0_17] : memref<8x1xf32, #tpu.memory_space<vmem>>, vector<8x1xf32>
      %24 = vector.shape_cast %23 : vector<8x1xf32> to vector<1x8x1xf32>
      %cst = arith.constant dense<0.000000e+00> : vector<1xf32>
      %25 = vector.multi_reduction <add>, %24, %cst [1, 2] : vector<1x8x1xf32> to vector<1xf32>
      %26 = vector.shape_cast %25 : vector<1xf32> to vector<1x1x1xf32>
      %27 = vector.extract %26[0, 0, 0] : f32 from vector<1x1x1xf32>
      %c0_18 = arith.constant 0 : index
      %c0_19 = arith.constant 0 : index
      %28 = vector.load %arg9[%c0_18, %c0_19] : memref<8x128xf32, #tpu.memory_space<vmem>>, vector<8x128xf32>
      %29 = vector.shape_cast %28 : vector<8x128xf32> to vector<1x8x128xf32>
      %cst_20 = arith.constant dense<0.000000e+00> : vector<1xf32>
      %30 = vector.multi_reduction <add>, %29, %cst_20 [1, 2] : vector<1x8x128xf32> to vector<1xf32>
      %31 = vector.shape_cast %30 : vector<1xf32> to vector<1x1x1xf32>
      %32 = vector.extract %31[0, 0, 0] : f32 from vector<1x1x1xf32>
      %33 = tpu.iota {dimensions = array<i32: 0>} : vector<8x128xi32>
      %34 = tpu.iota {dimensions = array<i32: 1>} : vector<8x128xi32>
      %c0_i32_21 = arith.constant 0 : i32
      %35 = vector.broadcast %c0_i32_21 : i32 to vector<8x128xi32>
      %36 = arith.cmpi eq, %33, %35 : vector<8x128xi32>
      %c0_i32_22 = arith.constant 0 : i32
      %37 = vector.broadcast %c0_i32_22 : i32 to vector<8x128xi32>
      %38 = arith.cmpi eq, %34, %37 : vector<8x128xi32>
      %39 = arith.andi %36, %38 : vector<8x128xi1>
      %c1_i32_23 = arith.constant 1 : i32
      %40 = vector.broadcast %c1_i32_23 : i32 to vector<8x128xi32>
      %41 = arith.cmpi eq, %34, %40 : vector<8x128xi32>
      %42 = arith.andi %36, %41 : vector<8x128xi1>
      %cst_24 = arith.constant 0.000000e+00 : f32
      %43 = vector.broadcast %32 : f32 to vector<8x128xf32>
      %44 = vector.broadcast %cst_24 : f32 to vector<8x128xf32>
      %45 = arith.select %42, %43, %44 : vector<8x128xi1>, vector<8x128xf32>
      %46 = vector.broadcast %27 : f32 to vector<8x128xf32>
      %47 = arith.select %39, %46, %45 : vector<8x128xi1>, vector<8x128xf32>
      %c0_25 = arith.constant 0 : index
      %c0_26 = arith.constant 0 : index
      %48 = vector.load %arg7[%c0_25, %c0_26] : memref<8x128xf32, #tpu.memory_space<vmem>>, vector<8x128xf32>
      tpu.vector_store %arg7[%c0_25, %c0_26], %47 {strides = array<i32>} : memref<8x128xf32, #tpu.memory_space<vmem>>, vector<8x128xf32>,
    } else {
    }
    return
  }
  func.func @transform_0(%arg0: i32, %arg1: i32) -> (i32, i32) {
    %c1_i32 = arith.constant 1 : i32
    %0 = arith.muli %arg0, %c1_i32 : i32
    %1 = arith.addi %0, %arg1 : i32
    %c0_i32 = arith.constant 0 : i32
    %c0_i32_0 = arith.constant 0 : i32
    return %1, %c0_i32 : i32, i32
  }
  func.func @transform_1(%arg0: i32, %arg1: i32) -> (i32, i32) {
    %c1_i32 = arith.constant 1 : i32
    %0 = arith.muli %arg0, %c1_i32 : i32
    %1 = arith.addi %0, %arg1 : i32
    %c0_i32 = arith.constant 0 : i32
    %c0_i32_0 = arith.constant 0 : i32
    return %1, %c0_i32 : i32, i32
  }
  func.func @transform_2(%arg0: i32, %arg1: i32) -> (i32, i32) {
    %c1_i32 = arith.constant 1 : i32
    %0 = arith.muli %arg0, %c1_i32 : i32
    %1 = arith.addi %0, %arg1 : i32
    %c0_i32 = arith.constant 0 : i32
    %c0_i32_0 = arith.constant 0 : i32
    return %1, %c0_i32 : i32, i32
  }
  func.func @transform_3(%arg0: i32, %arg1: i32) -> (i32, i32) {
    %c1_i32 = arith.constant 1 : i32
    %0 = arith.muli %arg0, %c1_i32 : i32
    %1 = arith.addi %0, %arg1 : i32
    %c0_i32 = arith.constant 0 : i32
    %c0_i32_0 = arith.constant 0 : i32
    return %1, %c0_i32 : i32, i32
  }
  func.func @transform_4(%arg0: i32, %arg1: i32) -> (i32, i32) {
    %c1_i32 = arith.constant 1 : i32
    %0 = arith.muli %arg0, %c1_i32 : i32
    %1 = arith.addi %0, %arg1 : i32
    %c0_i32 = arith.constant 0 : i32
    %c0_i32_0 = arith.constant 0 : i32
    return %1, %c0_i32 : i32, i32
  }
  func.func @transform_5(%arg0: i32, %arg1: i32) -> (i32, i32) {
    %c0_i32 = arith.constant 0 : i32
    %c0_i32_0 = arith.constant 0 : i32
    return %arg0, %c0_i32 : i32, i32
  }
}

</mosaic_0001>

<llo_original>
// kernel: tpu_custom_call.1
$region0: #{tpu_custom_call.1}
  #allocation0 [shape = 'u32[]', space=smem, size = 0x4, offset = 0x4, fixed_abs, tag = 'smem constant byte address 0x4 - core index']
  #allocation1 [shape = 'u32[72,128]{1,0:T(1,128)}', space=vmem, size = 0x9000, scoped, tag = 'internal scratch']
  #allocation2 [shape = 'f32[8,1]{1,0:T(8,128)}', space=vmem, size = 0x1000, scoped, tag = 'scratch operand']
  #allocation3 [shape = 'f32[8,128]{1,0:T(8,128)}', space=vmem, size = 0x1000, scoped, tag = 'scratch operand']
  %s0 = inlined_call_operand.vmem [shape: f32[14,30], index: 0, kind: input, shape index: {}]
  %s1 = inlined_call_operand.vmem [shape: s32[14,1], index: 1, kind: input, shape index: {}]
  %s2 = inlined_call_operand.hbm [shape: f32[16,128], index: 2, kind: input, shape index: {}]
  %s3 = inlined_call_operand.hbm [shape: f32[16,128], index: 3, kind: input, shape index: {}]
  %s4 = inlined_call_operand.hbm [shape: f32[16,128], index: 4, kind: input, shape index: {}]
  %s5 = inlined_call_operand.hbm [shape: f32[16,128], index: 5, kind: output, shape index: {}]
  %s6 = sld [smem:[#allocation0]]
  $region81: #{tpu_custom_call.1} parent=0
    _
  %s8 = ssub.s32 1, %s6
  %s9 = scalar_select 0, %s8, %s6
  $region1: #{tpu_custom_call.1} parent=0
    #allocation4 [shape = 'u8[8192]{0}', space=vmem, size = 0x2000, scoped, tag = 'input window, operand 2']
    #allocation5 [shape = 's32[2]{0}', space=sflag, size = 0x8, scoped, tag = 'scoped memory for tpu_custom_call.1']
    #allocation6 [shape = 's32[2]{0}', space=sflag, size = 0x8, scoped, tag = 'scoped memory for tpu_custom_call.1']
    #allocation7 [shape = 'u8[8192]{0}', space=vmem, size = 0x2000, scoped, tag = 'input window, operand 3']
    #allocation8 [shape = 's32[2]{0}', space=sflag, size = 0x8, scoped, tag = 'scoped memory for tpu_custom_call.1']
    #allocation9 [shape = 'u8[8192]{0}', space=vmem, size = 0x2000, scoped, tag = 'input window, operand 4']
    #allocation10 [shape = 'u8[8192]{0}', space=vmem, size = 0x2000, scoped, tag = 'output window, operand 0']
    %10 = vsyncpa [#allocation5], 0
    %s11 = scalar_lea.sflag [#allocation5], 1
    %12 = vsyncpa %s11, 0
    %13 = vsyncpa [#allocation8], 0
    %s14 = scalar_lea.sflag [#allocation8], 1
    %15 = vsyncpa %s14, 0
    %16 = vsyncpa [#allocation6], 0
    %s17 = scalar_lea.sflag [#allocation6], 1
    %18 = vsyncpa %s17, 0
    loop: start=0, step=1, limit=4
    $region2: #{tpu_custom_call.1} parent=1 // loop_pre_header
      _
    $region3: #{tpu_custom_call.1} parent=1 // loop_header
      %s20 = sphi 0, %s24
      %p21 = scmp.ge.s32.totalorder %s20, 4
      %s27 = sphi 0, %s39
      %s28 = sphi 0, %s35
      %s29 = sphi 0, %s27
      %s30 = sphi 0, %s28
      %s31 = sphi 0, %s29
      %s32 = sphi 0, %s30
      %s44 = sphi 0, %s46
      %s47 = sphi 0, %s44
      %s48 = sphi 0, %s47
      %s64 = sphi 0, %s48
      %s72 = sphi 0, %s74
      %s75 = sphi 0, %s72
      %s76 = sphi 0, %s75
      %s92 = sphi 0, %s76
      %s100 = sphi 0, %s102
      %s103 = sphi 0, %s100
      %s104 = sphi 0, %s103
      %s120 = sphi 0, %s104
      %s128 = sphi 0, %s130
      %s131 = sphi 0, %s128
      %s132 = sphi 0, %s131
      %s148 = sphi 0, %s132
      %s156 = sphi 0, %s158
      %s159 = sphi 0, %s156
      %s160 = sphi 0, %s159
      %s176 = sphi 0, %s160
      %s182 = sphi 0, %s184
      %s185 = sphi 0, %s182
      %s186 = sphi 0, %s185
      %s202 = sphi 0, %s186
    $region4: #{tpu_custom_call.1} parent=1 // loop_header_branch
      %23 = sbr.rel (%p21) target = $region8
    $region5: #{tpu_custom_call.1} parent=1 // loop_body
      %s25 = ssub.s32 %s20, 1
      %s26 = ssub.s32 %s20, 2
      %s33 = sadd.s32 1, %s28
      %p34 = scmp.ge.s32.totalorder %s33, 1
      %s35 = scalar_select %p34, 0, %s33
      %s36 = sadd.s32 1, %s27
      %s37 = scalar_select %p34, %s36, %s27
      %p38 = scmp.ge.s32.totalorder %s37, 2
      %s39 = scalar_select %p38, 0, %s37
      %s40 = sadd.s32 %s27, %s28
      %s41 = sadd.s32 %s39, %s35
      %s42 = ssub.s32 %s40, %s41
      %p43 = scmp.eq.s32.totalorder %s42, 0
      %s45 = sadd.s32 %s44, 1
      %s46 = scalar_select %p43, %s44, %s45
      %p49 = pneg %p43
      %p50 = scmp.eq.s32.totalorder %s20, 1
      %p51 = por %p49, %p50
      %p52 = scmp.ne.s32.totalorder %s44, %s47
      %p53 = scmp.eq.s32.totalorder %s20, 0
      %p54 = por %p52, %p53
      %p55 = scmp.ne.s32.totalorder %s44, %s47
      %p56 = scmp.eq.s32.totalorder %s25, 1
      %p57 = por %p55, %p56
      %p58 = scmp.ne.s32.totalorder %s47, %s48
      %p59 = scmp.eq.s32.totalorder %s25, 0
      %p60 = por %p58, %p59
      %p61 = scmp.ne.s32.totalorder %s47, %s48
      %p62 = scmp.eq.s32.totalorder %s26, 1
      %p63 = por %p61, %p62
      %p65 = scmp.ne.s32.totalorder %s48, %s64
      %p66 = scmp.eq.s32.totalorder %s26, 0
      %p67 = por %p65, %p66
      %s68 = sadd.s32 %s27, %s28
      %s69 = sadd.s32 %s39, %s35
      %s70 = ssub.s32 %s68, %s69
      %p71 = scmp.eq.s32.totalorder %s70, 0
      %s73 = sadd.s32 %s72, 1
      %s74 = scalar_select %p71, %s72, %s73
      %p77 = pneg %p71
      %p78 = scmp.eq.s32.totalorder %s20, 1
      %p79 = por %p77, %p78
      %p80 = scmp.ne.s32.totalorder %s72, %s75
      %p81 = scmp.eq.s32.totalorder %s20, 0
      %p82 = por %p80, %p81
      %p83 = scmp.ne.s32.totalorder %s72, %s75
      %p84 = scmp.eq.s32.totalorder %s25, 1
      %p85 = por %p83, %p84
      %p86 = scmp.ne.s32.totalorder %s75, %s76
      %p87 = scmp.eq.s32.totalorder %s25, 0
      %p88 = por %p86, %p87
      %p89 = scmp.ne.s32.totalorder %s75, %s76
      %p90 = scmp.eq.s32.totalorder %s26, 1
      %p91 = por %p89, %p90
      %p93 = scmp.ne.s32.totalorder %s76, %s92
      %p94 = scmp.eq.s32.totalorder %s26, 0
      %p95 = por %p93, %p94
      %s96 = sadd.s32 %s27, %s28
      %s97 = sadd.s32 %s39, %s35
      %s98 = ssub.s32 %s96, %s97
      %p99 = scmp.eq.s32.totalorder %s98, 0
      %s101 = sadd.s32 %s100, 1
      %s102 = scalar_select %p99, %s100, %s101
      %p105 = pneg %p99
      %p106 = scmp.eq.s32.totalorder %s20, 1
      %p107 = por %p105, %p106
      %p108 = scmp.ne.s32.totalorder %s100, %s103
      %p109 = scmp.eq.s32.totalorder %s20, 0
      %p110 = por %p108, %p109
      %p111 = scmp.ne.s32.totalorder %s100, %s103
      %p112 = scmp.eq.s32.totalorder %s25, 1
      %p113 = por %p111, %p112
      %p114 = scmp.ne.s32.totalorder %s103, %s104
      %p115 = scmp.eq.s32.totalorder %s25, 0
      %p116 = por %p114, %p115
      %p117 = scmp.ne.s32.totalorder %s103, %s104
      %p118 = scmp.eq.s32.totalorder %s26, 1
      %p119 = por %p117, %p118
      %p121 = scmp.ne.s32.totalorder %s104, %s120
      %p122 = scmp.eq.s32.totalorder %s26, 0
      %p123 = por %p121, %p122
      %s124 = sadd.s32 %s27, %s28
      %s125 = sadd.s32 %s39, %s35
      %s126 = ssub.s32 %s124, %s125
      %p127 = scmp.eq.s32.totalorder %s126, 0
      %s129 = sadd.s32 %s128, 1
      %s130 = scalar_select %p127, %s128, %s129
      %p133 = pneg %p127
      %p134 = scmp.eq.s32.totalorder %s20, 1
      %p135 = por %p133, %p134
      %p136 = scmp.ne.s32.totalorder %s128, %s131
      %p137 = scmp.eq.s32.totalorder %s20, 0
      %p138 = por %p136, %p137
      %p139 = scmp.ne.s32.totalorder %s128, %s131
      %p140 = scmp.eq.s32.totalorder %s25, 1
      %p141 = por %p139, %p140
      %p142 = scmp.ne.s32.totalorder %s131, %s132
      %p143 = scmp.eq.s32.totalorder %s25, 0
      %p144 = por %p142, %p143
      %p145 = scmp.ne.s32.totalorder %s131, %s132
      %p146 = scmp.eq.s32.totalorder %s26, 1
      %p147 = por %p145, %p146
      %p149 = scmp.ne.s32.totalorder %s132, %s148
      %p150 = scmp.eq.s32.totalorder %s26, 0
      %p151 = por %p149, %p150
      %s152 = sadd.s32 %s27, %s28
      %s153 = sadd.s32 %s39, %s35
      %s154 = ssub.s32 %s152, %s153
      %p155 = scmp.eq.s32.totalorder %s154, 0
      %s157 = sadd.s32 %s156, 1
      %s158 = scalar_select %p155, %s156, %s157
      %p161 = pneg %p155
      %p162 = scmp.eq.s32.totalorder %s20, 1
      %p163 = por %p161, %p162
      %p164 = scmp.ne.s32.totalorder %s156, %s159
      %p165 = scmp.eq.s32.totalorder %s20, 0
      %p166 = por %p164, %p165
      %p167 = scmp.ne.s32.totalorder %s156, %s159
      %p168 = scmp.eq.s32.totalorder %s25, 1
      %p169 = por %p167, %p168
      %p170 = scmp.ne.s32.totalorder %s159, %s160
      %p171 = scmp.eq.s32.totalorder %s25, 0
      %p172 = por %p170, %p171
      %p173 = scmp.ne.s32.totalorder %s159, %s160
      %p174 = scmp.eq.s32.totalorder %s26, 1
      %p175 = por %p173, %p174
      %p177 = scmp.ne.s32.totalorder %s160, %s176
      %p178 = scmp.eq.s32.totalorder %s26, 0
      %p179 = por %p177, %p178
      %s180 = ssub.s32 %s27, %s39
      %p181 = scmp.eq.s32.totalorder %s180, 0
      %s183 = sadd.s32 %s182, 1
      %s184 = scalar_select %p181, %s182, %s183
      %p187 = pneg %p181
      %p188 = scmp.eq.s32.totalorder %s20, 1
      %p189 = por %p187, %p188
      %p190 = scmp.ne.s32.totalorder %s182, %s185
      %p191 = scmp.eq.s32.totalorder %s20, 0
      %p192 = por %p190, %p191
      %p193 = scmp.ne.s32.totalorder %s182, %s185
      %p194 = scmp.eq.s32.totalorder %s25, 1
      %p195 = por %p193, %p194
      %p196 = scmp.ne.s32.totalorder %s185, %s186
      %p197 = scmp.eq.s32.totalorder %s25, 0
      %p198 = por %p196, %p197
      %p199 = scmp.ne.s32.totalorder %s185, %s186
      %p200 = scmp.eq.s32.totalorder %s26, 1
      %p201 = por %p199, %p200
      %p203 = scmp.ne.s32.totalorder %s186, %s202
      %p204 = scmp.eq.s32.totalorder %s26, 0
      %p205 = por %p203, %p204
      %p206 = scmp.le.s32.totalorder 1, %s20
      %p207 = scmp.lt.s32.totalorder %s20, 3
      %p208 = pnand %p206, %p207
      %p209 = pneg %p208
      // Predicated region
      $region9: #{tpu_custom_call.1} parent=5 // pred_check
        _
      $region10: #{tpu_custom_call.1} parent=5 // pred_check_branch
        %211 = sbr.rel (%p208) target = $region12
      $region11: #{tpu_custom_call.1} parent=5 // pred_region
        %s212 = ssub.s32 %s20, 1
      $region12: #{tpu_custom_call.1} parent=5 // pred_fallthru
        _
      %p213 = scmp.lt.s32.totalorder %s20, 2
      // Predicated region
      $region13: #{tpu_custom_call.1} parent=5 // pred_check
        %p214 = pneg %p213
      $region14: #{tpu_custom_call.1} parent=5 // pred_check_branch
        %216 = sbr.rel (%p214) target = $region16
      $region15: #{tpu_custom_call.1} parent=5 // pred_region
        // Predicated region
        $region17: #{tpu_custom_call.1} parent=15 // pred_check
          %p217 = pneg %p54
        $region18: #{tpu_custom_call.1} parent=15 // pred_check_branch
          %219 = sbr.rel (%p217) target = $region20
        $region19: #{tpu_custom_call.1} parent=15 // pred_region
          %s220 = sadd.s32 %s27, %s28
          %p221 = scmp.lt.s32.totalorder %s220, 1
          %s222 = scalar_select %p221, %s220, 1
          %s223 = smul.addr %s222, 8
          %s224 = scalar_lea.vmem %s0, %s223
          %s225 = sadd.s32 %s27, %s28
        $region20: #{tpu_custom_call.1} parent=15 // pred_fallthru
          _
        // Predicated region
        $region21: #{tpu_custom_call.1} parent=15 // pred_check
          %p226 = pneg %p82
        $region22: #{tpu_custom_call.1} parent=15 // pred_check_branch
          %228 = sbr.rel (%p226) target = $region24
        $region23: #{tpu_custom_call.1} parent=15 // pred_region
          %s229 = sadd.s32 %s27, %s28
          %p230 = scmp.lt.s32.totalorder %s229, 1
          %s231 = scalar_select %p230, %s229, 1
          %s232 = smul.addr %s231, 8
          %s233 = scalar_lea.vmem %s1, %s232
          %s234 = sadd.s32 %s27, %s28
        $region24: #{tpu_custom_call.1} parent=15 // pred_fallthru
          _
        // Predicated region
        $region25: #{tpu_custom_call.1} parent=15 // pred_check
          %p235 = pneg %p110
        $region26: #{tpu_custom_call.1} parent=15 // pred_check_branch
          %237 = sbr.rel (%p235) target = $region28
        $region27: #{tpu_custom_call.1} parent=15 // pred_region
          %s238 = sand.u32 %s100, 1
          %s239 = scalar_lea.sflag [#allocation5], %s238
          %s240 = sand.u32 %s100, 1
          %s241 = smul.addr %s240, 8
          %s242 = scalar_lea.vmem [#allocation4], %s241
          %s243 = sadd.s32 %s27, %s28
          %245 = vsyncadd %s239, 0
          %s246 = smul.addr %s243, 8
          %s247 = scalar_lea.hbm %s2, %s246
          %s249 = sshll.u32 %s247, 4
          %s250 = int_to_ptr.hbm [resolvable:$true] %s249
          %s251 = sshll.u32 %s242, 4
          %s252 = int_to_ptr.vmem [resolvable:$true] %s251
          %254 = dma.hbm_to_vmem [thread:$0]  %s250, 128, %s252, %s239
        $region28: #{tpu_custom_call.1} parent=15 // pred_fallthru
          _
        // Predicated region
        $region29: #{tpu_custom_call.1} parent=15 // pred_check
          %p255 = pneg %p138
        $region30: #{tpu_custom_call.1} parent=15 // pred_check_branch
          %257 = sbr.rel (%p255) target = $region32
        $region31: #{tpu_custom_call.1} parent=15 // pred_region
          %s258 = sand.u32 %s20, 1
          %s259 = scalar_lea.sflag [#allocation8], %s258
          %s260 = sand.u32 %s128, 1
          %s261 = smul.addr %s260, 8
          %s262 = scalar_lea.vmem [#allocation7], %s261
          %s263 = sadd.s32 %s27, %s28
          %265 = vsyncadd %s259, 0
          %s266 = smul.addr %s263, 8
          %s267 = scalar_lea.hbm %s3, %s266
          %s269 = sshll.u32 %s267, 4
          %s270 = int_to_ptr.hbm [resolvable:$true] %s269
          %s271 = sshll.u32 %s262, 4
          %s272 = int_to_ptr.vmem [resolvable:$true] %s271
          %274 = dma.hbm_to_vmem [thread:$0]  %s270, 128, %s272, %s259
        $region32: #{tpu_custom_call.1} parent=15 // pred_fallthru
          _
        // Predicated region
        $region33: #{tpu_custom_call.1} parent=15 // pred_check
          %p275 = pneg %p166
        $region34: #{tpu_custom_call.1} parent=15 // pred_check_branch
          %277 = sbr.rel (%p275) target = $region36
        $region35: #{tpu_custom_call.1} parent=15 // pred_region
          %s278 = sand.u32 %s20, 1
          %s279 = scalar_lea.sflag [#allocation8], %s278
          %s280 = sand.u32 %s156, 1
          %s281 = smul.addr %s280, 8
          %s282 = scalar_lea.vmem [#allocation9], %s281
          %s283 = sadd.s32 %s27, %s28
          %285 = vsyncadd %s279, 0
          %s286 = smul.addr %s283, 8
          %s287 = scalar_lea.hbm %s4, %s286
          %s289 = sshll.u32 %s287, 4
          %s290 = int_to_ptr.hbm [resolvable:$true] %s289
          %s291 = sshll.u32 %s282, 4
          %s292 = int_to_ptr.vmem [resolvable:$true] %s291
          %294 = dma.hbm_to_vmem [thread:$0]  %s290, 128, %s292, %s279
        $region36: #{tpu_custom_call.1} parent=15 // pred_fallthru
          _
      $region16: #{tpu_custom_call.1} parent=5 // pred_fallthru
        _
      %p295 = scmp.le.s32.totalorder 1, %s20
      %p296 = scmp.lt.s32.totalorder %s20, 3
      %p297 = pnand %p295, %p296
      %p298 = pneg %p297
      // Predicated region
      $region37: #{tpu_custom_call.1} parent=5 // pred_check
        _
      $region38: #{tpu_custom_call.1} parent=5 // pred_check_branch
        %300 = sbr.rel (%p297) target = $region40
      $region39: #{tpu_custom_call.1} parent=5 // pred_region
        %s301 = ssub.s32 %s20, 1
        %s302 = sand.u32 %s103, 1
        %s303 = scalar_lea.sflag [#allocation5], %s302
        %s304 = sand.u32 %s103, 1
        %s305 = smul.addr %s304, 8
        %s306 = scalar_lea.vmem [#allocation4], %s305
        // Predicated region
        $region41: #{tpu_custom_call.1} parent=39 // pred_check
          %p307 = pneg %p116
        $region42: #{tpu_custom_call.1} parent=39 // pred_check_branch
          %309 = sbr.rel (%p307) target = $region44
        $region43: #{tpu_custom_call.1} parent=39 // pred_region
          %311 = dma.done %s303, 128
        $region44: #{tpu_custom_call.1} parent=39 // pred_fallthru
          _
        %s312 = sand.u32 %s25, 1
        %s313 = scalar_lea.sflag [#allocation8], %s312
        %s314 = sand.u32 %s131, 1
        %s315 = smul.addr %s314, 8
        %s316 = scalar_lea.vmem [#allocation7], %s315
        // Predicated region
        $region45: #{tpu_custom_call.1} parent=39 // pred_check
          %p317 = pneg %p144
        $region46: #{tpu_custom_call.1} parent=39 // pred_check_branch
          %319 = sbr.rel (%p317) target = $region48
        $region47: #{tpu_custom_call.1} parent=39 // pred_region
          %321 = dma.done %s313, 128
        $region48: #{tpu_custom_call.1} parent=39 // pred_fallthru
          _
        %s322 = sand.u32 %s25, 1
        %s323 = scalar_lea.sflag [#allocation8], %s322
        %s324 = sand.u32 %s159, 1
        %s325 = smul.addr %s324, 8
        %s326 = scalar_lea.vmem [#allocation9], %s325
        // Predicated region
        $region49: #{tpu_custom_call.1} parent=39 // pred_check
          %p327 = pneg %p172
        $region50: #{tpu_custom_call.1} parent=39 // pred_check_branch
          %329 = sbr.rel (%p327) target = $region52
        $region51: #{tpu_custom_call.1} parent=39 // pred_region
          %331 = dma.done %s323, 128
        $region52: #{tpu_custom_call.1} parent=39 // pred_fallthru
          _
        %s332 = sadd.s32 %s29, %s30
        %p333 = scmp.lt.s32.totalorder %s332, 1
        %s334 = scalar_select %p333, %s332, 1
        %s335 = smul.addr %s334, 8
        %s336 = scalar_lea.vmem %s0, %s335
        %p337 = pneg %p60
        %p338 = pneg %p57
        %s339 = sadd.s32 %s29, %s30
        %p340 = scmp.lt.s32.totalorder %s339, 1
        %s341 = scalar_select %p340, %s339, 1
        %s342 = smul.addr %s341, 8
        %s343 = scalar_lea.vmem %s1, %s342
        %p344 = pneg %p88
        %p345 = pneg %p85
        %s346 = sand.u32 %s103, 1
        %s347 = scalar_lea.sflag [#allocation5], %s346
        %s348 = sand.u32 %s103, 1
        %s349 = smul.addr %s348, 8
        %s350 = scalar_lea.vmem [#allocation4], %s349
        %p351 = pneg %p116
        %p352 = pneg %p113
        %s353 = sand.u32 %s25, 1
        %s354 = scalar_lea.sflag [#allocation8], %s353
        %s355 = sand.u32 %s131, 1
        %s356 = smul.addr %s355, 8
        %s357 = scalar_lea.vmem [#allocation7], %s356
        %p358 = pneg %p144
        %p359 = pneg %p141
        %s360 = sand.u32 %s25, 1
        %s361 = scalar_lea.sflag [#allocation8], %s360
        %s362 = sand.u32 %s159, 1
        %s363 = smul.addr %s362, 8
        %s364 = scalar_lea.vmem [#allocation9], %s363
        %p365 = pneg %p172
        %p366 = pneg %p169
        %p367 = pneg %p198
        %p368 = pneg %p195
        %s369 = sand.u32 %s185, 1
        %s370 = scalar_lea.sflag [#allocation6], %s369
        %s371 = sand.u32 %s185, 1
        %s372 = smul.addr %s371, 8
        %s373 = scalar_lea.vmem [#allocation10], %s372
        %s374 = sadd.s32 %s29, %s30
        %p375 = scmp.lt.s32.totalorder %s374, 1
        %s376 = scalar_select %p375, %s374, 1
        %s377 = smul.addr %s376, 8
        %s378 = scalar_lea.vmem %s0, %s377
        %s379 = sadd.s32 %s29, %s30
        %s380 = sadd.s32 %s29, %s30
        %p381 = scmp.lt.s32.totalorder %s380, 1
        %s382 = scalar_select %p381, %s380, 1
        %s383 = smul.addr %s382, 8
        %s384 = scalar_lea.vmem %s1, %s383
        %s385 = sadd.s32 %s29, %s30
        %s386 = sadd.s32 %s29, %s30
        %s387 = sadd.s32 %s29, %s30
        %s388 = sadd.s32 %s29, %s30
        %s389 = sadd.s32 %s29, %s30
        %p390 = scmp.eq.s32.totalorder %s30, 0
        // Predicated region
        $region53: #{tpu_custom_call.1} parent=39 // pred_check
          %p391 = pneg %p390
        $region54: #{tpu_custom_call.1} parent=39 // pred_check_branch
          %393 = sbr.rel (%p391) target = $region56
        $region55: #{tpu_custom_call.1} parent=39 // pred_region
          %vm394 = vcmask 7168
          %395 = vst.msk [vmem:[#allocation2] sm:$0xff] %vm394, 0.0
          %396 = vst [vmem:[#allocation3] sm:$0xff] 0.0
        $region56: #{tpu_custom_call.1} parent=39 // pred_fallthru
          _
        %p397 = scmp.eq.s32.totalorder %s389, 1
        // Predicated region
        $region57: #{tpu_custom_call.1} parent=39 // pred_check
          %p398 = pneg %p397
        $region58: #{tpu_custom_call.1} parent=39 // pred_check_branch
          %400 = sbr.rel (%p398) target = $region60
        $region59: #{tpu_custom_call.1} parent=39 // pred_region
          %v401 = vld [vmem:[%s378] sm:$0xff]
          %v402 = vld [vmem:[%s384] sm:$0xff]
          %s403 = smul.u32 %s389, 8
          %v404 = vlaneseq
          %v405 = vshrl.u32 %v404, 7
          %v406 = vstv %s403
          %v407 = vadd.s32 %v406, %v405
          %vm408 = vcmp.lt.s32.totalorder %v407, 14
          %v409 = vsel %vm408, 1, 0
          %vm410 = vcmp.eq.s32.totalorder %v409, 1
          %v411 = vsel %vm410, %v401, 0.0
          %v412 = vlaneseq
          %v413 = vand.u32 %v412, 127
          %vm414 = vcmask 244736
          %v415 = vsel %vm414, %v411, -inf
          %416 = vmax.xlane.f32.xlu0 %v415
          %v417 = vpop.xlane.xlu0 %416
          %418 = vset.pattern.permute.xlu0 0
          %419 = vperm.xlu0 %418, %v402
          %v420 = vpop.permute.xlu0 %419
          %vm421 = vcmp.eq.s32.totalorder %v413, %v420
          %v422 = vsel %vm421, %v411, 0.0
          %v423 = vsel %vm414, %v422, 0.0
          %424 = vadd.xlane.f32.xlu0 %v423
          %v425 = vpop.xlane.xlu0 %424
          %v426 = vsub.f32 %v411, %v417
          %v427 = vmul.f32 %v426, 1.442695
          %v428 = vpow.pop %v427
          %v429 = vsel %vm414, %v428, 0.0
          %430 = vadd.xlane.f32.xlu0 %v429
          %v431 = vpop.xlane.xlu0 %430
          %v432 = vlog2.pop %v431
          %v433 = vmul.f32 %v432, 0.6931472
          %v434 = vadd.f32 %v433, %v417
          %v435 = vsub.f32 %v434, %v425
          %v436 = vsel %vm408, %v435, 0.0
          %v437 = vld [vmem:[#allocation2] sm:$0xff]
          %v438 = vadd.f32 %v437, %v436
          %vm439 = vcmask 7168
          %440 = vst.msk [vmem:[#allocation2] sm:$0xff] %vm439, %v438
        $region60: #{tpu_custom_call.1} parent=39 // pred_fallthru
          _
        %p441 = scmp.lt.s32.totalorder %s389, 1
        // Predicated region
        $region61: #{tpu_custom_call.1} parent=39 // pred_check
          %p442 = pneg %p441
        $region62: #{tpu_custom_call.1} parent=39 // pred_check_branch
          %444 = sbr.rel (%p442) target = $region64
        $region63: #{tpu_custom_call.1} parent=39 // pred_region
          %v445 = vld [vmem:[%s378] sm:$0xff]
          %v446 = vld [vmem:[%s384] sm:$0xff]
          %v447 = vlaneseq
          %v448 = vand.u32 %v447, 127
          %vm449 = vcmask 244736
          %v450 = vsel %vm449, %v445, -inf
          %451 = vmax.xlane.f32.xlu0 %v450
          %v452 = vpop.xlane.xlu0 %451
          %453 = vset.pattern.permute.xlu0 0
          %454 = vperm.xlu0 %453, %v446
          %v455 = vpop.permute.xlu0 %454
          %vm456 = vcmp.eq.s32.totalorder %v448, %v455
          %v457 = vsel %vm456, %v445, 0.0
          %v458 = vsel %vm449, %v457, 0.0
          %459 = vadd.xlane.f32.xlu0 %v458
          %v460 = vpop.xlane.xlu0 %459
          %v461 = vsub.f32 %v445, %v452
          %v462 = vmul.f32 %v461, 1.442695
          %v463 = vpow.pop %v462
          %v464 = vsel %vm449, %v463, 0.0
          %465 = vadd.xlane.f32.xlu0 %v464
          %v466 = vpop.xlane.xlu0 %465
          %v467 = vlog2.pop %v466
          %v468 = vmul.f32 %v467, 0.6931472
          %v469 = vadd.f32 %v468, %v452
          %v470 = vsub.f32 %v469, %v460
          %v471 = vld [vmem:[#allocation2] sm:$0xff]
          %v472 = vadd.f32 %v471, %v470
          %vm473 = vcmask 7168
          %474 = vst.msk [vmem:[#allocation2] sm:$0xff] %vm473, %v472
        $region64: #{tpu_custom_call.1} parent=39 // pred_fallthru
          _
        %v475 = vld [vmem:[%s306] sm:$0xff]
        %v476 = vld [vmem:[%s326] sm:$0xff]
        %v477 = vmul.f32 %v475, %v476
        %v478 = vld [vmem:[%s316] sm:$0xff]
        %v479 = vsub.f32 %v477, %v478
        %v480 = vld [vmem:[#allocation3] sm:$0xff]
        %v481 = vmul.f32 %v479, %v479
        %v482 = vadd.f32 %v480, %v481
        %483 = vst [vmem:[#allocation3] sm:$0xff] %v482
        // Predicated region
        $region65: #{tpu_custom_call.1} parent=39 // pred_check
          %p484 = pneg %p390
        $region66: #{tpu_custom_call.1} parent=39 // pred_check_branch
          %486 = sbr.rel (%p484) target = $region68
        $region67: #{tpu_custom_call.1} parent=39 // pred_region
          %v487 = vld [vmem:[#allocation2] sm:$0xff]
          %vm488 = vcmask 7168
          %v489 = vsel %vm488, %v487, 0.0
          %490 = vadd.xlane.f32.xlu0 %v489
          %v491 = vpop.xlane.xlu0 %490
          %v492 = vrot.slane %v491, 4
          %v493 = vadd.f32 %v491, %v492
          %v494 = vrot.slane %v493, 2
          %v495 = vadd.f32 %v493, %v494
          %v496 = vrot.slane %v495, 1
          %v497 = vadd.f32 %v495, %v496
          %s498 = vtos %v497
          %v499 = vld [vmem:[#allocation3] sm:$0xff]
          %500 = vadd.xlane.f32.xlu0 %v499
          %v501 = vpop.xlane.xlu0 %500
          %v502 = vrot.slane %v501, 4
          %v503 = vadd.f32 %v501, %v502
          %v504 = vrot.slane %v503, 2
          %v505 = vadd.f32 %v503, %v504
          %v506 = vrot.slane %v505, 1
          %v507 = vadd.f32 %v505, %v506
          %s508 = vtos %v507
          %v509 = vlaneseq
          %v510 = vshrl.u32 %v509, 7
          %v511 = vlaneseq
          %v512 = vand.u32 %v511, 127
          %vm513 = vcmp.eq.s32.totalorder %v510, 0
          %vm514 = vcmp.eq.s32.totalorder %v512, 0
          %vm515 = vmand %vm513, %vm514
          %vm516 = vcmp.eq.s32.totalorder %v512, 1
          %vm517 = vmand %vm513, %vm516
          %v518 = vstv %s508
          %v519 = vsel %vm517, %v518, 0.0
          %v520 = vstv %s498
          %v521 = vsel %vm515, %v520, %v519
          %522 = vst [vmem:[%s373] sm:$0xff] %v521
        $region68: #{tpu_custom_call.1} parent=39 // pred_fallthru
          _
        %s523 = sand.u32 %s185, 1
        %s524 = scalar_lea.sflag [#allocation6], %s523
        %s525 = sand.u32 %s185, 1
        %s526 = smul.addr %s525, 8
        %s527 = scalar_lea.vmem [#allocation10], %s526
        // Predicated region
        $region69: #{tpu_custom_call.1} parent=39 // pred_check
          %p528 = pneg %p195
        $region70: #{tpu_custom_call.1} parent=39 // pred_check_branch
          %530 = sbr.rel (%p528) target = $region72
        $region71: #{tpu_custom_call.1} parent=39 // pred_region
          %532 = vsyncadd %s524, 0
          %s533 = smul.addr %s29, 8
          %s534 = scalar_lea.hbm %s5, %s533
          %s536 = sshll.u32 %s527, 4
          %s537 = int_to_ptr.vmem [resolvable:$true] %s536
          %s538 = sshll.u32 %s534, 4
          %s539 = int_to_ptr.hbm [resolvable:$true] %s538
          %541 = dma.vmem_to_hbm [thread:$0]  %s537, 128, %s539, %s524
        $region72: #{tpu_custom_call.1} parent=39 // pred_fallthru
          _
      $region40: #{tpu_custom_call.1} parent=5 // pred_fallthru
        _
      %p542 = scmp.le.s32.totalorder 2, %s20
      // Predicated region
      $region73: #{tpu_custom_call.1} parent=5 // pred_check
        %p543 = pneg %p542
      $region74: #{tpu_custom_call.1} parent=5 // pred_check_branch
        %545 = sbr.rel (%p543) target = $region76
      $region75: #{tpu_custom_call.1} parent=5 // pred_region
        %s546 = ssub.s32 %s20, 2
        // Predicated region
        $region77: #{tpu_custom_call.1} parent=75 // pred_check
          %p547 = pneg %p201
        $region78: #{tpu_custom_call.1} parent=75 // pred_check_branch
          %549 = sbr.rel (%p547) target = $region80
        $region79: #{tpu_custom_call.1} parent=75 // pred_region
          %s550 = sand.u32 %s186, 1
          %s551 = scalar_lea.sflag [#allocation6], %s550
          %s552 = sand.u32 %s186, 1
          %s553 = smul.addr %s552, 8
          %s554 = scalar_lea.vmem [#allocation10], %s553
          %556 = dma.done %s551, 128
        $region80: #{tpu_custom_call.1} parent=75 // pred_fallthru
          _
      $region76: #{tpu_custom_call.1} parent=5 // pred_fallthru
        _
    $region6: #{tpu_custom_call.1} parent=1 // loop_footer
      %s24 = sadd.s32 1, %s20
    $region7: #{tpu_custom_call.1} parent=1 // loop_footer_branch
      %19 = sbr.rel target = $region3
    $region8: #{tpu_custom_call.1} parent=1 // loop_exit
      _
    %557 = vsyncpa [#allocation5], 1
    %s558 = scalar_lea.sflag [#allocation5], 1
    %559 = vsyncpa %s558, 1
    %560 = vsyncpa [#allocation8], 1
    %s561 = scalar_lea.sflag [#allocation8], 1
    %562 = vsyncpa %s561, 1
    %563 = vsyncpa [#allocation6], 1
    %s564 = scalar_lea.sflag [#allocation6], 1
    %565 = vsyncpa %s564, 1

</llo_original>
